<compile_context>
chip_gen: v5e
topology: v5e:2x2
jax: 0.10.0
libtpu: 0.0.40
codegen_flags: <defaults>
</compile_context>

<pallas_src>
import jax
import jax.numpy as jnp
from jax import lax
from jax.experimental import pallas as pl
from jax.experimental.pallas import tpu as pltpu

_LANE = 128


def _round_up(n, m):
    return ((n + m - 1) // m) * m


def _make_kernel(n_parts, hidden, latent, b2_off, bh_off, logstd_min, logstd_max):
    """Build the fused kernel for `n_parts` input chunks (obs [, actions])."""

    def kernel(*refs):
        # refs: x_parts[0..n-1], w1_parts[0..n-1], w2, w_heads, biases, out
        x_refs = refs[:n_parts]
        w1_refs = refs[n_parts:2 * n_parts]
        w2_ref, wh_ref, b_ref, out_ref = refs[2 * n_parts:]

        # Packed biases, each segment starts at a 128-lane boundary.
        b1 = b_ref[:, :hidden]                       # (1, hidden)
        b2 = b_ref[:, b2_off:b2_off + latent]        # (1, latent)
        bh = b_ref[:, bh_off:bh_off + 2]             # (1, 2)  = [bmu | bsg]

        # Backbone layer 1: split matmul (obs part + actions part) into the
        # same f32 accumulator -- replaces the wrapper-side concat.
        h1 = jnp.dot(x_refs[0][...], w1_refs[0][...],
                     preferred_element_type=jnp.float32)
        for p in range(1, n_parts):
            h1 = h1 + jnp.dot(x_refs[p][...], w1_refs[p][...],
                              preferred_element_type=jnp.float32)
        h1 = jnp.maximum(h1 + b1, 0.0)

        # Backbone layer 2.
        logits = jnp.maximum(
            jnp.dot(h1, w2_ref[...], preferred_element_type=jnp.float32) + b2,
            0.0)

        # Fused heads: column 0 = mu, column 1 = logstd (single MXU matmul).
        heads = jnp.dot(logits, wh_ref[...],
                        preferred_element_type=jnp.float32) + bh   # (tb, 2)

        # Column 1 -> std = exp(clip(logstd)); column 0 -> mu (identity).
        # exp over both columns is free EUP work; select on the VPU.
        col = lax.broadcasted_iota(jnp.int32, heads.shape, 1)
        std_col = jnp.exp(jnp.clip(heads, logstd_min, logstd_max))
        out_ref[...] = jnp.where(col == 0, heads, std_col)

    return kernel


def _choose_tile(B, requested):
    """Batch tile: as big as requested (amortize ~0.35us/step overhead) but
    never more than ceil(B/2) rounded to 8, so the grid has >=2 steps and
    v7x's two TensorCores both get work.  Tiny batches fall back to a single
    full-extent block (still valid under the (8,128) rule)."""
    if B <= 8:
        return B
    half = _round_up(pl.cdiv(B, 2), 8)
    return max(8, min(int(requested), half))


def dist_critic_forward(obs, actions, params, *, tile_b=8192, input_buffers=2,
                        logstd_range=(-2.0, 5.0)):
    """obs: [B, obs_dim] f32, actions: [B, act_dim] (or None).

    Returns (mu, std), each [B, 1] f32 -- matching DistCritic.forward.
    """
    obs = obs.astype(jnp.float32)
    x_parts = [obs]
    w1_parts = [params["w1_obs"]]
    if actions is not None:
        actions = actions.astype(jnp.float32).reshape(actions.shape[0], -1)
        x_parts.append(actions)
        w1_parts.append(params["w1_act"])

    B = obs.shape[0]
    hidden = int(params["w1_obs"].shape[1])
    latent = int(params["w2"].shape[1])
    b2_off = _round_up(hidden, _LANE)
    bh_off = b2_off + _round_up(latent, _LANE)

    # --- tiling: big tiles, padded batch, always-pipelined grid -------------
    tb = _choose_tile(B, tile_b)
    B_pad = _round_up(B, tb)
    if B_pad != B:
        pad = B_pad - B
        x_parts = [jnp.pad(xp, ((0, pad), (0, 0))) for xp in x_parts]
    grid = (B_pad // tb,)

    n_parts = len(x_parts)
    kernel = _make_kernel(n_parts, hidden, latent, b2_off, bh_off,
                          float(logstd_range[0]), float(logstd_range[1]))

    batch_map = lambda i: (i, 0)
    const_map = lambda i: (0, 0)
    if input_buffers > 2:
        # Deeper input buffering -- only worth it if a bundle dump shows
        # exposed input DMA at large tiles; default stays at 2.
        x_specs = [pl.BlockSpec((tb, int(xp.shape[1])), batch_map,
                                pipeline_mode=pl.Buffered(int(input_buffers)))
                   for xp in x_parts]
    else:
        x_specs = [pl.BlockSpec((tb, int(xp.shape[1])), batch_map)
                   for xp in x_parts]
    w_specs = [pl.BlockSpec(tuple(wp.shape), const_map) for wp in w1_parts]
    w_specs += [pl.BlockSpec(tuple(params["w2"].shape), const_map),
                pl.BlockSpec(tuple(params["w_heads"].shape), const_map),
                pl.BlockSpec(tuple(params["biases"].shape), const_map)]

    args = tuple(x_parts) + tuple(w1_parts) + (
        params["w2"], params["w_heads"], params["biases"])

    # --- VMEM budget: tiles (double/triple buffered) + f32 intermediates ----
    feat = sum(int(xp.shape[1]) for xp in x_parts)
    weight_bytes = 4 * sum(int(w.size) for w in w1_parts) + 4 * (
        int(params["w2"].size) + int(params["w_heads"].size)
        + int(params["biases"].size))
    bufs = max(2, int(input_buffers))
    tile_io_bytes = 4 * tb * (feat + 2)                 # inputs + output, per buffer
    interm_bytes = 4 * tb * (hidden + latent + 4)       # h1 / logits / heads (f32)
    vmem_est = bufs * tile_io_bytes + 2 * weight_bytes + interm_bytes + (4 << 20)
    vmem_limit = int(min(max(vmem_est, 32 << 20), 48 << 20))

    flops = 2 * B_pad * (sum(int(w.shape[0]) * int(w.shape[1]) for w in w1_parts)
                         + hidden * latent + latent * 2)
    bytes_accessed = 4 * (sum(int(a.size) for a in args) + B_pad * 2)
    cost = pl.CostEstimate(flops=flops, transcendentals=2 * B_pad,
                           bytes_accessed=bytes_accessed)

    out = pl.pallas_call(
        kernel,
        out_shape=jax.ShapeDtypeStruct((B_pad, 2), jnp.float32),
        grid=grid,
        in_specs=x_specs + w_specs,
        out_specs=pl.BlockSpec((tb, 2), batch_map),
        compiler_params=pltpu.CompilerParams(
            dimension_semantics=("parallel",),
            vmem_limit_bytes=vmem_limit),
        cost_estimate=cost,
    )(*args)

    return out[:B, 0:1], out[:B, 1:2]


def make_params(key, obs_dim, act_dim, hidden, latent):
    """Deterministic init mirroring the PyTorch module.

    Backbone layers: PyTorch default Linear init (uniform +/- 1/sqrt(fan_in)).
    mu / sigma layers: uniform(-0.001, 0.001) as in DistCritic.__init__.
    Weights stored as (in, out); kernel-side params are pre-packed once.
    """
    d_in = obs_dim + act_dim
    ks = jax.random.split(key, 8)
    bound1 = 1.0 / jnp.sqrt(jnp.float32(d_in))
    bound2 = 1.0 / jnp.sqrt(jnp.float32(hidden))
    w1 = jax.random.uniform(ks[0], (d_in, hidden), jnp.float32, -bound1, bound1)
    b1 = jax.random.uniform(ks[1], (1, hidden), jnp.float32, -bound1, bound1)
    w2 = jax.random.uniform(ks[2], (hidden, latent), jnp.float32, -bound2, bound2)
    b2 = jax.random.uniform(ks[3], (1, latent), jnp.float32, -bound2, bound2)
    wmu = jax.random.uniform(ks[4], (latent, 1), jnp.float32, -0.001, 0.001)
    bmu = jax.random.uniform(ks[5], (1, 1), jnp.float32, -0.001, 0.001)
    wsg = jax.random.uniform(ks[6], (latent, 1), jnp.float32, -0.001, 0.001)
    bsg = jax.random.uniform(ks[7], (1, 1), jnp.float32, -0.001, 0.001)

    # --- kernel-side packing (done once, outside the kernel) ---
    b2_off = _round_up(hidden, _LANE)
    bh_off = b2_off + _round_up(latent, _LANE)
    biases = jnp.zeros((1, bh_off + _LANE), jnp.float32)
    biases = biases.at[:, :hidden].set(b1)
    biases = biases.at[:, b2_off:b2_off + latent].set(b2)
    biases = biases.at[:, bh_off:bh_off + 2].set(
        jnp.concatenate([bmu, bsg], axis=1))

    return {
        # packed / split params used by the kernel
        "w1_obs": w1[:obs_dim],
        "w1_act": w1[obs_dim:],
        "w2": w2,
        "w_heads": jnp.concatenate([wmu, wsg], axis=1),   # (latent, 2)
        "biases": biases,                                  # (1, 3*128)
        # original (torch-layout) params for the pure-JAX reference
        "w1": w1, "b1": b1, "b2": b2,
        "wmu": wmu, "bmu": bmu, "wsg": wsg, "bsg": bsg,
    }


def reference_forward(obs, actions, params):
    """Pure-JAX reference mirroring DistCritic.forward (eval-mode dropout)."""
    if actions is not None:
        x = jnp.concatenate([obs, actions.reshape(actions.shape[0], -1)], axis=1)
    else:
        x = obs
    h1 = jnp.maximum(x @ params["w1"] + params["b1"], 0.0)
    logits = jnp.maximum(h1 @ params["w2"] + params["b2"], 0.0)
    mu = logits @ params["wmu"] + params["bmu"]
    logstd = jnp.clip(logits @ params["wsg"] + params["bsg"], -2.0, 5.0)
    return mu, jnp.exp(logstd)


if __name__ == "__main__":
    key = jax.random.PRNGKey(0)
    k_obs, k_act, k_par, k_par2, k_big_obs, k_big_act = jax.random.split(key, 6)

    B, OBS_DIM, ACT_DIM = 2, 16, 4
    HIDDEN, LATENT = 32, 32          # backbone.output_dim == LATENT

    obs = jax.random.normal(k_obs, (B, OBS_DIM), dtype=jnp.float32)
    actions = jax.random.normal(k_act, (B, ACT_DIM), dtype=jnp.float32)

    # --- case 1: obs + actions (tiny batch -> single full-extent block) ---
    params = make_params(k_par, OBS_DIM, ACT_DIM, HIDDEN, LATENT)
    mu, std = dist_critic_forward(obs, actions, params)
    jax.block_until_ready((mu, std))
    mu_ref, std_ref = reference_forward(obs, actions, params)
    assert mu.shape == (B, 1) and std.shape == (B, 1)
    assert jnp.allclose(mu, mu_ref, atol=1e-5, rtol=1e-5)
    assert jnp.allclose(std, std_ref, atol=1e-5, rtol=1e-5)
    assert bool(jnp.all(std > 0))

    # --- case 2: actions is None (backbone input dim == obs_dim) ---
    params2 = make_params(k_par2, OBS_DIM, 0, HIDDEN, LATENT)
    mu2, std2 = dist_critic_forward(obs, None, params2)
    jax.block_until_ready((mu2, std2))
    mu2_ref, std2_ref = reference_forward(obs, None, params2)
    assert mu2.shape == (B, 1) and std2.shape == (B, 1)
    assert jnp.allclose(mu2, mu2_ref, atol=1e-5, rtol=1e-5)
    assert jnp.allclose(std2, std2_ref, atol=1e-5, rtol=1e-5)
    assert bool(jnp.all(std2 > 0))

    # --- case 3: larger, non-divisible batch exercises the padded, >=2-step
    #             "parallel" grid path (tile=504, B padded 1000 -> 1008). ---
    B_BIG = 1000
    obs_b = jax.random.normal(k_big_obs, (B_BIG, OBS_DIM), dtype=jnp.float32)
    act_b = jax.random.normal(k_big_act, (B_BIG, ACT_DIM), dtype=jnp.float32)
    mu3, std3 = dist_critic_forward(obs_b, act_b, params)
    jax.block_until_ready((mu3, std3))
    mu3_ref, std3_ref = reference_forward(obs_b, act_b, params)
    assert mu3.shape == (B_BIG, 1) and std3.shape == (B_BIG, 1)
    assert jnp.allclose(mu3, mu3_ref, atol=1e-4, rtol=1e-4)
    assert jnp.allclose(std3, std3_ref, atol=1e-4, rtol=1e-4)
    assert bool(jnp.all(std3 > 0))

    print("KERNEL_OK")
</pallas_src>

<mosaic_0001>
module attributes {stable_mosaic.version = 11 : i64} {
  func.func @kernel(%arg0: i32, %arg1: memref<2x16xf32, #tpu.memory_space<vmem>>, %arg2: memref<2x4xf32, #tpu.memory_space<vmem>>, %arg3: memref<16x32xf32, #tpu.memory_space<vmem>>, %arg4: memref<4x32xf32, #tpu.memory_space<vmem>>, %arg5: memref<32x32xf32, #tpu.memory_space<vmem>>, %arg6: memref<32x2xf32, #tpu.memory_space<vmem>>, %arg7: memref<1x384xf32, #tpu.memory_space<vmem>>, %arg8: memref<2x2xf32, #tpu.memory_space<vmem>>) attributes {dimension_semantics = [#tpu.dimension_semantics<parallel>], iteration_bounds = array<i64: 1>, scalar_prefetch = 0 : i64, scratch_operands = 0 : i64, tpu.core_type = #tpu.core_type<tc>, window_params = [{transform_indices = @transform_0, window_bounds = array<i64: 2, 16>}, {transform_indices = @transform_1, window_bounds = array<i64: 2, 4>}, {pipeline_mode = #tpu.pipeline_mode<synchronous>, transform_indices = @transform_2, window_bounds = array<i64: 16, 32>}, {pipeline_mode = #tpu.pipeline_mode<synchronous>, transform_indices = @transform_3, window_bounds = array<i64: 4, 32>}, {pipeline_mode = #tpu.pipeline_mode<synchronous>, transform_indices = @transform_4, window_bounds = array<i64: 32, 32>}, {pipeline_mode = #tpu.pipeline_mode<synchronous>, transform_indices = @transform_5, window_bounds = array<i64: 32, 2>}, {pipeline_mode = #tpu.pipeline_mode<synchronous>, transform_indices = @transform_6, window_bounds = array<i64: 1, 384>}, {transform_indices = @transform_7, window_bounds = array<i64: 2, 2>}]} {
    %c0 = arith.constant 0 : index
    %c0_0 = arith.constant 0 : index
    %0 = vector.load %arg7[%c0, %c0_0] : memref<1x384xf32, #tpu.memory_space<vmem>>, vector<1x32xf32>
    %c0_1 = arith.constant 0 : index
    %c128 = arith.constant 128 : index
    %1 = vector.load %arg7[%c0_1, %c128] : memref<1x384xf32, #tpu.memory_space<vmem>>, vector<1x32xf32>
    %c0_2 = arith.constant 0 : index
    %c256 = arith.constant 256 : index
    %2 = vector.load %arg7[%c0_2, %c256] : memref<1x384xf32, #tpu.memory_space<vmem>>, vector<1x2xf32>
    %c0_3 = arith.constant 0 : index
    %c0_4 = arith.constant 0 : index
    %3 = vector.load %arg1[%c0_3, %c0_4] : memref<2x16xf32, #tpu.memory_space<vmem>>, vector<2x16xf32>
    %c0_5 = arith.constant 0 : index
    %c0_6 = arith.constant 0 : index
    %4 = vector.load %arg3[%c0_5, %c0_6] : memref<16x32xf32, #tpu.memory_space<vmem>>, vector<16x32xf32>
    %cst = arith.constant dense<0.000000e+00> : vector<2x32xf32>
    %5 = tpu.matmul %3, %4, %cst {dimension_numbers = #tpu.dot_dimension_numbers<[1], [0], [0], [1], [0, 0, 1, 1], [], []>} : vector<2x16xf32>, vector<16x32xf32>, vector<2x32xf32> -> vector<2x32xf32>
    %c0_7 = arith.constant 0 : index
    %c0_8 = arith.constant 0 : index
    %6 = vector.load %arg2[%c0_7, %c0_8] : memref<2x4xf32, #tpu.memory_space<vmem>>, vector<2x4xf32>
    %c0_9 = arith.constant 0 : index
    %c0_10 = arith.constant 0 : index
    %7 = vector.load %arg4[%c0_9, %c0_10] : memref<4x32xf32, #tpu.memory_space<vmem>>, vector<4x32xf32>
    %cst_11 = arith.constant dense<0.000000e+00> : vector<2x32xf32>
    %8 = tpu.matmul %6, %7, %cst_11 {dimension_numbers = #tpu.dot_dimension_numbers<[1], [0], [0], [1], [0, 0, 1, 1], [], []>} : vector<2x4xf32>, vector<4x32xf32>, vector<2x32xf32> -> vector<2x32xf32>
    %9 = arith.addf %5, %8 : vector<2x32xf32>
    %10 = vector.broadcast %0 : vector<1x32xf32> to vector<2x32xf32>
    %11 = arith.addf %9, %10 : vector<2x32xf32>
    %cst_12 = arith.constant 0.000000e+00 : f32
    %12 = vector.broadcast %cst_12 : f32 to vector<2x32xf32>
    %13 = arith.maximumf %11, %12 : vector<2x32xf32>
    %c0_13 = arith.constant 0 : index
    %c0_14 = arith.constant 0 : index
    %14 = vector.load %arg5[%c0_13, %c0_14] : memref<32x32xf32, #tpu.memory_space<vmem>>, vector<32x32xf32>
    %cst_15 = arith.constant dense<0.000000e+00> : vector<2x32xf32>
    %15 = tpu.matmul %13, %14, %cst_15 {dimension_numbers = #tpu.dot_dimension_numbers<[1], [0], [0], [1], [0, 0, 1, 1], [], []>} : vector<2x32xf32>, vector<32x32xf32>, vector<2x32xf32> -> vector<2x32xf32>
    %16 = vector.broadcast %1 : vector<1x32xf32> to vector<2x32xf32>
    %17 = arith.addf %15, %16 : vector<2x32xf32>
    %cst_16 = arith.constant 0.000000e+00 : f32
    %18 = vector.broadcast %cst_16 : f32 to vector<2x32xf32>
    %19 = arith.maximumf %17, %18 : vector<2x32xf32>
    %c0_17 = arith.constant 0 : index
    %c0_18 = arith.constant 0 : index
    %20 = vector.load %arg6[%c0_17, %c0_18] : memref<32x2xf32, #tpu.memory_space<vmem>>, vector<32x2xf32>
    %cst_19 = arith.constant dense<0.000000e+00> : vector<2x2xf32>
    %21 = tpu.matmul %19, %20, %cst_19 {dimension_numbers = #tpu.dot_dimension_numbers<[1], [0], [0], [1], [0, 0, 1, 1], [], []>} : vector<2x32xf32>, vector<32x2xf32>, vector<2x2xf32> -> vector<2x2xf32>
    %22 = vector.broadcast %2 : vector<1x2xf32> to vector<2x2xf32>
    %23 = arith.addf %21, %22 : vector<2x2xf32>
    %24 = tpu.iota {dimensions = array<i32: 1>} : vector<2x2xi32>
    %cst_20 = arith.constant -2.000000e+00 : f32
    %cst_21 = arith.constant 5.000000e+00 : f32
    %25 = vector.broadcast %cst_20 : f32 to vector<2x2xf32>
    %26 = arith.maximumf %25, %23 : vector<2x2xf32>
    %27 = vector.broadcast %cst_21 : f32 to vector<2x2xf32>
    %28 = arith.minimumf %27, %26 : vector<2x2xf32>
    %29 = math.exp %28 : vector<2x2xf32>
    %c0_i32 = arith.constant 0 : i32
    %30 = vector.broadcast %c0_i32 : i32 to vector<2x2xi32>
    %31 = arith.cmpi eq, %24, %30 : vector<2x2xi32>
    %32 = arith.select %31, %23, %29 : vector<2x2xi1>, vector<2x2xf32>
    %c0_22 = arith.constant 0 : index
    %c0_23 = arith.constant 0 : index
    %33 = vector.load %arg8[%c0_22, %c0_23] : memref<2x2xf32, #tpu.memory_space<vmem>>, vector<2x2xf32>
    tpu.vector_store %arg8[%c0_22, %c0_23], %32 {strides = array<i32>} : memref<2x2xf32, #tpu.memory_space<vmem>>, vector<2x2xf32>,
    return
  }
  func.func @transform_0(%arg0: i32) -> (i32, i32) {
    %c0_i32 = arith.constant 0 : i32
    %c0_i32_0 = arith.constant 0 : i32
    return %arg0, %c0_i32 : i32, i32
  }
  func.func @transform_1(%arg0: i32) -> (i32, i32) {
    %c0_i32 = arith.constant 0 : i32
    %c0_i32_0 = arith.constant 0 : i32
    return %arg0, %c0_i32 : i32, i32
  }
  func.func @transform_2(%arg0: i32) -> (i32, i32) {
    %c0_i32 = arith.constant 0 : i32
    %c0_i32_0 = arith.constant 0 : i32
    %c0_i32_1 = arith.constant 0 : i32
    return %c0_i32, %c0_i32_0 : i32, i32
  }
  func.func @transform_3(%arg0: i32) -> (i32, i32) {
    %c0_i32 = arith.constant 0 : i32
    %c0_i32_0 = arith.constant 0 : i32
    %c0_i32_1 = arith.constant 0 : i32
    return %c0_i32, %c0_i32_0 : i32, i32
  }
  func.func @transform_4(%arg0: i32) -> (i32, i32) {
    %c0_i32 = arith.constant 0 : i32
    %c0_i32_0 = arith.constant 0 : i32
    %c0_i32_1 = arith.constant 0 : i32
    return %c0_i32, %c0_i32_0 : i32, i32
  }
  func.func @transform_5(%arg0: i32) -> (i32, i32) {
    %c0_i32 = arith.constant 0 : i32
    %c0_i32_0 = arith.constant 0 : i32
    %c0_i32_1 = arith.constant 0 : i32
    return %c0_i32, %c0_i32_0 : i32, i32
  }
  func.func @transform_6(%arg0: i32) -> (i32, i32) {
    %c0_i32 = arith.constant 0 : i32
    %c0_i32_0 = arith.constant 0 : i32
    %c0_i32_1 = arith.constant 0 : i32
    return %c0_i32, %c0_i32_0 : i32, i32
  }
  func.func @transform_7(%arg0: i32) -> (i32, i32) {
    %c0_i32 = arith.constant 0 : i32
    %c0_i32_0 = arith.constant 0 : i32
    return %arg0, %c0_i32 : i32, i32
  }
}

</mosaic_0001>

<llo_original>
// kernel: tpu_custom_call.1
$region0: #{tpu_custom_call.1}
  #allocation0 [shape = 'u32[]', space=smem, size = 0x4, offset = 0x4, fixed_abs, tag = 'smem constant byte address 0x4 - core index']
  #allocation1 [shape = 'u32[72,128]{1,0:T(1,128)}', space=vmem, size = 0x9000, scoped, tag = 'internal scratch']
  %s0 = inlined_call_operand.hbm [shape: f32[2,16], index: 0, kind: input, shape index: {}]
  %s1 = inlined_call_operand.hbm [shape: f32[2,4], index: 1, kind: input, shape index: {}]
  %s2 = inlined_call_operand.hbm [shape: f32[16,32], index: 2, kind: input, shape index: {}]
  %s3 = inlined_call_operand.vmem [shape: f32[4,32], index: 3, kind: input, shape index: {}]
  %s4 = inlined_call_operand.vmem [shape: f32[32,32], index: 4, kind: input, shape index: {}]
  %s5 = inlined_call_operand.vmem [shape: f32[32,2], index: 5, kind: input, shape index: {}]
  %s6 = inlined_call_operand.vmem [shape: f32[1,384], index: 6, kind: input, shape index: {}]
  %s7 = inlined_call_operand.hbm [shape: f32[2,2], index: 7, kind: output, shape index: {}]
  %s8 = sld [smem:[#allocation0]]
  $region50: #{tpu_custom_call.1} parent=0
    _
  %s10 = ssub.s32 1, %s8
  %s11 = scalar_select 0, %s10, %s8
  $region1: #{tpu_custom_call.1} parent=0
    #allocation2 [shape = 'u8[1024]{0}', space=vmem, size = 0x400, scoped, tag = 'input window, operand 0, single buffered']
    #allocation3 [shape = 's32[1]{0}', space=sflag, size = 0x4, scoped, tag = 'scoped memory for tpu_custom_call.1']
    #allocation4 [shape = 's32[1]{0}', space=sflag, size = 0x4, scoped, tag = 'scoped memory for tpu_custom_call.1']
    #allocation5 [shape = 'u8[1024]{0}', space=vmem, size = 0x400, scoped, tag = 'input window, operand 1, single buffered']
    #allocation6 [shape = 's32[1]{0}', space=sflag, size = 0x4, scoped, tag = 'scoped memory for tpu_custom_call.1']
    #allocation7 [shape = 'u8[8192]{0}', space=vmem, size = 0x2000, scoped, tag = 'input window, operand 2, single buffered']
    #allocation8 [shape = 'u8[1024]{0}', space=vmem, size = 0x400, scoped, tag = 'output window, operand 0, single buffered']
    %12 = vsyncpa [#allocation3], 0
    %13 = vsyncpa [#allocation6], 0
    %14 = vsyncpa [#allocation4], 0
    // Predicated region
    $region2: #{tpu_custom_call.1} parent=1 // pred_check
      _
    $region3: #{tpu_custom_call.1} parent=1 // pred_check_branch
      %16 = sbr.rel (0) target = $region5
    $region4: #{tpu_custom_call.1} parent=1 // pred_region
      %18 = vsyncadd [#allocation3], 0
      %s20 = sshll.u32 %s0, 4
      %s21 = int_to_ptr.hbm [resolvable:$true] %s20
      %s22 = sshll.u32 [#allocation2], 4
      %s23 = int_to_ptr.vmem [resolvable:$true] %s22
      %25 = dma.hbm_to_vmem [thread:$0]  %s21, 32, %s23, [#allocation3]
    $region5: #{tpu_custom_call.1} parent=1 // pred_fallthru
      _
    // Predicated region
    $region6: #{tpu_custom_call.1} parent=1 // pred_check
      _
    $region7: #{tpu_custom_call.1} parent=1 // pred_check_branch
      %27 = sbr.rel (0) target = $region9
    $region8: #{tpu_custom_call.1} parent=1 // pred_region
      %29 = vsyncadd [#allocation6], 0
      %s31 = sshll.u32 %s1, 4
      %s32 = int_to_ptr.hbm [resolvable:$true] %s31
      %s33 = sshll.u32 [#allocation5], 4
      %s34 = int_to_ptr.vmem [resolvable:$true] %s33
      %36 = dma.hbm_to_vmem [thread:$0]  %s32, 32, %s34, [#allocation6]
    $region9: #{tpu_custom_call.1} parent=1 // pred_fallthru
      _
    // Predicated region
    $region10: #{tpu_custom_call.1} parent=1 // pred_check
      _
    $region11: #{tpu_custom_call.1} parent=1 // pred_check_branch
      %38 = sbr.rel (0) target = $region13
    $region12: #{tpu_custom_call.1} parent=1 // pred_region
      %40 = vsyncadd [#allocation6], 0
      %s41 = sshll.u32 %s2, 4
      %s42 = int_to_ptr.hbm [resolvable:$true] %s41
      %s43 = sshll.u32 [#allocation7], 4
      %s44 = int_to_ptr.vmem [resolvable:$true] %s43
      %49 = dma.hbm_to_vmem [thread:$0]  %s42, 256, %s44, [#allocation6], 128, 128, 8
    $region13: #{tpu_custom_call.1} parent=1 // pred_fallthru
      _
    // Predicated region
    $region14: #{tpu_custom_call.1} parent=1 // pred_check
      _
    $region15: #{tpu_custom_call.1} parent=1 // pred_check_branch
      %51 = sbr.rel (0) target = $region17
    $region16: #{tpu_custom_call.1} parent=1 // pred_region
      _
    $region17: #{tpu_custom_call.1} parent=1 // pred_fallthru
      _
    // Predicated region
    $region18: #{tpu_custom_call.1} parent=1 // pred_check
      _
    $region19: #{tpu_custom_call.1} parent=1 // pred_check_branch
      %53 = sbr.rel (0) target = $region21
    $region20: #{tpu_custom_call.1} parent=1 // pred_region
      _
    $region21: #{tpu_custom_call.1} parent=1 // pred_fallthru
      _
    // Predicated region
    $region22: #{tpu_custom_call.1} parent=1 // pred_check
      _
    $region23: #{tpu_custom_call.1} parent=1 // pred_check_branch
      %55 = sbr.rel (0) target = $region25
    $region24: #{tpu_custom_call.1} parent=1 // pred_region
      _
    $region25: #{tpu_custom_call.1} parent=1 // pred_fallthru
      _
    // Predicated region
    $region26: #{tpu_custom_call.1} parent=1 // pred_check
      _
    $region27: #{tpu_custom_call.1} parent=1 // pred_check_branch
      %57 = sbr.rel (0) target = $region29
    $region28: #{tpu_custom_call.1} parent=1 // pred_region
      _
    $region29: #{tpu_custom_call.1} parent=1 // pred_fallthru
      _
    // Predicated region
    $region30: #{tpu_custom_call.1} parent=1 // pred_check
      _
    $region31: #{tpu_custom_call.1} parent=1 // pred_check_branch
      %59 = sbr.rel (0) target = $region33
    $region32: #{tpu_custom_call.1} parent=1 // pred_region
      %61 = dma.done [#allocation3], 32
    $region33: #{tpu_custom_call.1} parent=1 // pred_fallthru
      _
    // Predicated region
    $region34: #{tpu_custom_call.1} parent=1 // pred_check
      _
    $region35: #{tpu_custom_call.1} parent=1 // pred_check_branch
      %63 = sbr.rel (0) target = $region37
    $region36: #{tpu_custom_call.1} parent=1 // pred_region
      %65 = dma.done [#allocation6], 32
    $region37: #{tpu_custom_call.1} parent=1 // pred_fallthru
      _
    // Predicated region
    $region38: #{tpu_custom_call.1} parent=1 // pred_check
      _
    $region39: #{tpu_custom_call.1} parent=1 // pred_check_branch
      %67 = sbr.rel (0) target = $region41
    $region40: #{tpu_custom_call.1} parent=1 // pred_region
      %69 = dma.done [#allocation6], 256
    $region41: #{tpu_custom_call.1} parent=1 // pred_fallthru
      _
    %v70 = vld [vmem:[%s6] sm:$0x1]
    %v71 = vld [vmem:[%s6 + $0x1] sm:$0x1]
    %v72 = vld [vmem:[%s6 + $0x2] sm:$0x1]
    %v73 = vld [vmem:[#allocation2] sm:$0x3]
    %v74 = vld [vmem:[#allocation7] sm:$0xff]
    %v75 = vld [vmem:[#allocation7 + $0x8] sm:$0xff]
    %v76 = vld [vmem:[#allocation5] sm:$0x3]
    %v77 = vld [vmem:[%s3] sm:$0xf]
    %vm78 = vcmask 31744
    %v80 = vsel %vm78, %v76, 0
    %vm82 = vcmask 1043456
    %v84 = vsel %vm82, %v77, 0
    %86 = vmatpush.msra.mxu0 0.0
    %87 = vmatpush.msra.mxu0 0.0
    %88 = vmatpush.msra.mxu0 0.0
    %89 = vmatpush.msra.mxu0 0.0
    %90 = vmatpush.msra.mxu0 0.0
    %91 = vmatpush.msra.mxu0 0.0
    %92 = vmatpush.msra.mxu0 0.0
    %93 = vmatpush.msra.mxu0 0.0
    %94 = vmatpush.msra.mxu0 0.0
    %95 = vmatpush.msra.mxu0 0.0
    %96 = vmatpush.msra.mxu0 0.0
    %97 = vmatpush.msra.mxu0 0.0
    %98 = vmatpush.msra.mxu0 0.0
    %99 = vmatpush.msra.mxu0 0.0
    %100 = vmatpush.msra.mxu0 0.0
    %101 = vmatpush.msra.mxu0 %v84
    %102 = vmatmul.f32.gmra.mxu0 %v80
    %v103 = vpop.f32.mrf.mxu0
    %v104 = vadd.f32 0.0, %v103
    %105 = vdwg.mxu0
    %vm106 = vcmask 130048
    %v108 = vsel %vm106, %v73, 0
    %110 = vmatpush.msra.mxu0 0.0
    %111 = vmatpush.msra.mxu0 0.0
    %112 = vmatpush.msra.mxu0 0.0
    %113 = vmatpush.msra.mxu0 0.0
    %114 = vmatpush.msra.mxu0 0.0
    %115 = vmatpush.msra.mxu0 0.0
    %116 = vmatpush.msra.mxu0 0.0
    %117 = vmatpush.msra.mxu0 0.0
    %118 = vmatpush.msra.mxu0 0.0
    %119 = vmatpush.msra.mxu0 0.0
    %120 = vmatpush.msra.mxu0 0.0
    %121 = vmatpush.msra.mxu0 0.0
    %122 = vmatpush.msra.mxu0 0.0
    %123 = vmatpush.msra.mxu0 0.0
    %124 = vmatpush.msra.mxu0 %v75
    %125 = vmatpush.msra.mxu0 %v74
    %126 = vmatmul.f32.gmra.mxu0 %v108
    %v127 = vpop.f32.mrf.mxu0
    %v128 = vadd.f32 %v104, %v127
    %129 = vdwg.mxu0
    %v131 = vperm.slane %v70, 0
    %v133 = vadd.f32 %v128, %v131
    %v134 = vmax.f32 %v133, 0.0
    %v135 = vld [vmem:[%s4] sm:$0xff]
    %v136 = vld [vmem:[%s4 + $0x8] sm:$0xff]
    %v137 = vld [vmem:[%s4 + $0x10] sm:$0xff]
    %v138 = vld [vmem:[%s4 + $0x18] sm:$0xff]
    %v140 = vperm.slane %v71, 0
    %vm142 = vcmask 261120
    %v144 = vsel %vm142, %v134, 0
    %146 = vmatpush.msra.mxu0 0.0
    %147 = vmatpush.msra.mxu0 0.0
    %148 = vmatpush.msra.mxu0 0.0
    %149 = vmatpush.msra.mxu0 0.0
    %150 = vmatpush.msra.mxu0 0.0
    %151 = vmatpush.msra.mxu0 0.0
    %152 = vmatpush.msra.mxu0 0.0
    %153 = vmatpush.msra.mxu0 0.0
    %154 = vmatpush.msra.mxu0 0.0
    %155 = vmatpush.msra.mxu0 0.0
    %156 = vmatpush.msra.mxu0 0.0
    %157 = vmatpush.msra.mxu0 0.0
    %158 = vmatpush.msra.mxu0 %v138
    %159 = vmatpush.msra.mxu0 %v137
    %160 = vmatpush.msra.mxu0 %v136
    %161 = vmatpush.msra.mxu0 %v135
    %162 = vmatmul.f32.gmra.mxu0 %v144
    %v163 = vpop.f32.mrf.mxu0
    %v164 = vadd.f32 %v140, %v163
    %165 = vdwg.mxu0
    %v166 = vmax.f32 %v164, 0.0
    %v167 = vld [vmem:[%s5] sm:$0xff]
    %v168 = vld [vmem:[%s5 + $0x8] sm:$0xff]
    %v169 = vld [vmem:[%s5 + $0x10] sm:$0xff]
    %v170 = vld [vmem:[%s5 + $0x18] sm:$0xff]
    %v172 = vperm.slane %v72, 0
    %v175 = vsel %vm142, %v166, 0
    %177 = vmatpush.msra.mxu0 0.0
    %178 = vmatpush.msra.mxu0 0.0
    %179 = vmatpush.msra.mxu0 0.0
    %180 = vmatpush.msra.mxu0 0.0
    %181 = vmatpush.msra.mxu0 0.0
    %182 = vmatpush.msra.mxu0 0.0
    %183 = vmatpush.msra.mxu0 0.0
    %184 = vmatpush.msra.mxu0 0.0
    %185 = vmatpush.msra.mxu0 0.0
    %186 = vmatpush.msra.mxu0 0.0
    %187 = vmatpush.msra.mxu0 0.0
    %188 = vmatpush.msra.mxu0 0.0
    %189 = vmatpush.msra.mxu0 %v170
    %190 = vmatpush.msra.mxu0 %v169
    %191 = vmatpush.msra.mxu0 %v168
    %192 = vmatpush.msra.mxu0 %v167
    %193 = vmatmul.f32.gmra.mxu0 %v175
    %v194 = vpop.f32.mrf.mxu0
    %v195 = vadd.f32 %v172, %v194
    %196 = vdwg.mxu0
    %v197 = vlaneseq
    %v198 = vand.u32 %v197, 127
    %v199 = vmax.f32 %v195, -2.0
    %v200 = vmin.f32 %v199, 5.0
    %v201 = vmul.f32 %v200, 1.442695
    %v202 = vpow.pop %v201
    %vm203 = vcmp.eq.s32.totalorder %v198, 0
    %v204 = vsel %vm203, %v195, %v202
    %vm205 = vcmask 9216
    %206 = vst.msk [vmem:[#allocation8] sm:$0x3] %vm205, %v204
    // Predicated region
    $region42: #{tpu_custom_call.1} parent=1 // pred_check
      _
    $region43: #{tpu_custom_call.1} parent=1 // pred_check_branch
      %208 = sbr.rel (0) target = $region45
    $region44: #{tpu_custom_call.1} parent=1 // pred_region
      %210 = vsyncadd [#allocation4], 0
      %s212 = sshll.u32 [#allocation8], 4
      %s213 = int_to_ptr.vmem [resolvable:$true] %s212
      %s214 = sshll.u32 %s7, 4
      %s215 = int_to_ptr.hbm [resolvable:$true] %s214
      %217 = dma.vmem_to_hbm [thread:$0]  %s213, 32, %s215, [#allocation4]
    $region45: #{tpu_custom_call.1} parent=1 // pred_fallthru
      _
    // Predicated region
    $region46: #{tpu_custom_call.1} parent=1 // pred_check
      _
    $region47: #{tpu_custom_call.1} parent=1 // pred_check_branch
      %219 = sbr.rel (0) target = $region49
    $region48: #{tpu_custom_call.1} parent=1 // pred_region
      %221 = dma.done [#allocation4], 32
    $region49: #{tpu_custom_call.1} parent=1 // pred_fallthru
      _
    %222 = vsyncpa [#allocation3], 1
    %223 = vsyncpa [#allocation6], 1
    %224 = vsyncpa [#allocation4], 1

</llo_original>
